<compile_context>
chip_gen: v7x
topology: tpu7x:2x2x1
jax: 0.10.0
libtpu: 0.0.40
codegen_flags: <defaults>
</compile_context>

<pallas_src>
import functools

import numpy as np
import jax
import jax.numpy as jnp
from jax.experimental import pallas as pl
from jax.experimental.pallas import tpu as pltpu


# --------------------------------------------------------------------------
# Pallas kernel: one (row_tile, t_tile) slab of the block-diagonal cost
# --------------------------------------------------------------------------
def _cost_kernel(posneg_ref, pbox_ref, onehot_ref, tbox_ref, cost_ref,
                 *, bbox_sign, w_giou):
    # Classification cost: gather over classes as a one-hot matmul on the MXU.
    # cost_class is pre-folded into posneg, so no slab-wide scale here.
    acc = jnp.dot(posneg_ref[...], onehot_ref[...],
                  preferred_element_type=jnp.float32)            # (rt, tt)

    pb = pbox_ref[...]     # (rt, 16): wb*cx, wb*cy, wb*w, wb*h, x0,y0,x1,y1, area, w, h
    tb = tbox_ref[...]     # (16, tt): same rows, transposed

    # L1 cdist on (cost_bbox-scaled) cxcywh, accumulated straight into acc.
    for k in range(4):
        d = jnp.abs(pb[:, k:k + 1] - tb[k:k + 1, :])
        acc = acc + d if bbox_sign >= 0.0 else acc - d

    px0, py0, px1, py1 = pb[:, 4:5], pb[:, 5:6], pb[:, 6:7], pb[:, 7:8]
    area_p = pb[:, 8:9]
    pw, ph = pb[:, 9:10], pb[:, 10:11]
    tx0, ty0, tx1, ty1 = tb[4:5, :], tb[5:6, :], tb[6:7, :], tb[7:8, :]
    area_t = tb[8:9, :]
    tw, th = tb[9:10, :], tb[10:11, :]

    # Unclamped intersection extents (reused for the enclosing box below).
    iw = jnp.minimum(px1, tx1) - jnp.maximum(px0, tx0)
    ih = jnp.minimum(py1, ty1) - jnp.maximum(py0, ty0)
    inter = jnp.maximum(iw, 0.0) * jnp.maximum(ih, 0.0)
    union = (area_p + area_t) - inter
    # Divisions -> EUP approx reciprocal (VALU is the binding slot).
    iou = inter * pl.reciprocal(union, approx=True)
    # Enclosing box via width identity: max(x1)-min(x0) == pw + tw - iw.
    area_c = ((pw + tw) - iw) * ((ph + th) - ih)
    giou = iou - (area_c - union) * pl.reciprocal(area_c, approx=True)

    if w_giou == 1.0:
        cost_ref[...] = acc - giou
    else:
        cost_ref[...] = acc - w_giou * giou


# --------------------------------------------------------------------------
# Wrapper helpers
# --------------------------------------------------------------------------
def _round_up(x, m):
    return ((x + m - 1) // m) * m


def _tpu_vmem_bytes():
    try:
        return int(pltpu.get_tpu_info().vmem_capacity_bytes)
    except Exception:
        pass
    try:  # generation-aware fallback so v5e/v6e don't get demoted to v7x tiling
        kind = jax.devices()[0].device_kind.lower()
        if "v7" in kind:
            return 64 << 20
        if any(k in kind for k in ("v4", "v5", "v6")):
            return 128 << 20
    except Exception:
        pass
    return 64 << 20


def _pick_row_tile(nq8, t_tile, nc_pad, vmem_cap):
    """Largest multiple-of-8 row tile whose working set fits a VMEM budget."""
    budget = int(0.6 * vmem_cap)

    def bytes_needed(rt):
        slabs = 8 * rt * t_tile * 4                        # acc + elementwise temps
        out2 = 2 * rt * t_tile * 4                         # double-buffered output
        ins2 = 2 * (rt * (nc_pad * 2 + 16 * 4)             # posneg(bf16) + pfeat(f32)
                    + nc_pad * t_tile * 2                  # one-hot (bf16)
                    + 16 * t_tile * 4)                     # tfeat (f32)
        return slabs + out2 + ins2

    tile = _round_up(min(512, nq8), 8)
    while tile > 8 and bytes_needed(tile) > budget:
        tile = max(8, _round_up(tile // 2, 8))
    return tile


def _cxcywh_features(boxes, w_bbox_abs):
    """[cx,cy,w,h] -> 16-wide feature rows:
       0..3  : |cost_bbox| * [cx,cy,w,h]  (L1 operands, weight pre-folded)
       4..7  : x0, y0, x1, y1
       8     : area
       9,10  : w, h (unscaled; enclosing-box width identity)
       11..15: zero padding."""
    b = boxes.astype(jnp.float32)
    cx, cy, w, h = b[..., 0], b[..., 1], b[..., 2], b[..., 3]
    x0, y0 = cx - 0.5 * w, cy - 0.5 * h
    x1, y1 = cx + 0.5 * w, cy + 0.5 * h
    area = (x1 - x0) * (y1 - y0)
    feat = jnp.stack([w_bbox_abs * cx, w_bbox_abs * cy, w_bbox_abs * w,
                      w_bbox_abs * h, x0, y0, x1, y1, area, w, h], axis=-1)
    pad = [(0, 0)] * (feat.ndim - 1) + [(0, 16 - 11)]
    return jnp.pad(feat, pad)


_UNIT_BOX = (0.5, 0.5, 1.0, 1.0)   # padding box: area 1 -> no Inf/NaN from recip


# --------------------------------------------------------------------------
# Block-diagonal cost matrix (Pallas)
# --------------------------------------------------------------------------
def compute_cost_blocks(pred_logits, pred_boxes, tgt_ids_b, tgt_boxes_b,
                        cost_class=1.0, cost_bbox=1.0, cost_giou=1.0):
    """Per-batch (block-diagonal) matching cost.

    tgt_ids_b:   (bs, t_max) int32  -- per-batch labels  (padding: any valid id)
    tgt_boxes_b: (bs, t_max, 4) f32 -- per-batch boxes   (padding: unit box)
    Returns (bs, num_queries, t_pad) float32; columns >= the batch's true
    target count are padding and must be sliced off by the caller.
    """
    bs, nq, nc = pred_logits.shape
    t_max = int(tgt_boxes_b.shape[1])
    nc_pad = _round_up(nc, 128)
    nq8 = _round_up(nq, 8)
    vmem_cap = _tpu_vmem_bytes()

    # Lane (T) tiling: single tile for the common small-T case, 512-wide
    # lane tiles for very large per-batch target counts.
    t_pad128 = _round_up(max(t_max, 1), 128)
    t_tile = t_pad128 if t_pad128 <= 1024 else 512
    t_pad = _round_up(t_pad128, t_tile)

    row_tile = _pick_row_tile(nq8, t_tile, nc_pad, vmem_cap)
    nq_pad = _round_up(nq8, row_tile)
    # v7x megacore: avoid a single-step grid when it can legally be split.
    if bs * (nq_pad // row_tile) * (t_pad // t_tile) == 1 and row_tile % 16 == 0:
        row_tile //= 2
        nq_pad = _round_up(nq8, row_tile)

    # ---- precompute small O(N)/O(T) operands; fold weights here ------------
    alpha, gamma, eps = 0.25, 2.0, 1e-8
    logits = pred_logits.astype(jnp.float32)
    p = jax.nn.sigmoid(logits)
    neg = (1.0 - alpha) * (p ** gamma) * (-jnp.log(1.0 - p + eps))
    pos = alpha * ((1.0 - p) ** gamma) * (-jnp.log(p + eps))
    posneg = (float(cost_class) * (pos - neg)).astype(jnp.bfloat16)     # (bs,nq,nc)
    posneg = jnp.pad(posneg, ((0, 0), (0, nq_pad - nq), (0, nc_pad - nc)))

    ids = jnp.clip(tgt_ids_b.astype(jnp.int32), 0, nc - 1)             # as in reference
    onehot = jax.nn.one_hot(ids, nc_pad, dtype=jnp.bfloat16)           # (bs,t_max,nc_pad)
    onehot = jnp.swapaxes(onehot, 1, 2)                                # (bs,nc_pad,t_max)
    onehot = jnp.pad(onehot, ((0, 0), (0, 0), (0, t_pad - t_max)))

    w_bbox_abs = abs(float(cost_bbox))
    bbox_sign = 1.0 if float(cost_bbox) >= 0.0 else -1.0
    unit = jnp.asarray(_UNIT_BOX, jnp.float32)

    pboxes = pred_boxes.astype(jnp.float32)
    if nq_pad > nq:
        pboxes = jnp.concatenate(
            [pboxes, jnp.broadcast_to(unit, (bs, nq_pad - nq, 4))], axis=1)
    pfeat = _cxcywh_features(pboxes, w_bbox_abs)                        # (bs,nq_pad,16)

    tboxes = tgt_boxes_b.astype(jnp.float32)
    if t_pad > t_max:
        tboxes = jnp.concatenate(
            [tboxes, jnp.broadcast_to(unit, (bs, t_pad - t_max, 4))], axis=1)
    tfeat = jnp.swapaxes(_cxcywh_features(tboxes, w_bbox_abs), 1, 2)    # (bs,16,t_pad)

    # ---- Pallas: grid over (batch, row tiles, T tiles), all parallel --------
    kernel = functools.partial(_cost_kernel, bbox_sign=bbox_sign,
                               w_giou=float(cost_giou))
    grid = (bs, nq_pad // row_tile, t_pad // t_tile)

    need = (8 * row_tile * t_tile * 4 + 2 * row_tile * t_tile * 4
            + 2 * (row_tile * (nc_pad * 2 + 64)
                   + nc_pad * t_tile * 2 + 16 * t_tile * 4))
    vmem_limit = int(min(0.85 * vmem_cap, max(need + (8 << 20), 32 << 20)))

    cost = pl.pallas_call(
        kernel,
        out_shape=jax.ShapeDtypeStruct((bs, nq_pad, t_pad), jnp.float32),
        grid=grid,
        in_specs=[
            pl.BlockSpec((None, row_tile, nc_pad), lambda b, i, j: (b, i, 0)),  # posneg
            pl.BlockSpec((None, row_tile, 16), lambda b, i, j: (b, i, 0)),      # pred feats
            pl.BlockSpec((None, nc_pad, t_tile), lambda b, i, j: (b, 0, j)),    # one-hot
            pl.BlockSpec((None, 16, t_tile), lambda b, i, j: (b, 0, j)),        # tgt feats
        ],
        out_specs=pl.BlockSpec((None, row_tile, t_tile), lambda b, i, j: (b, i, j)),
        compiler_params=pltpu.CompilerParams(
            dimension_semantics=("parallel", "parallel", "parallel"),
            vmem_limit_bytes=vmem_limit),
    )(posneg, pfeat, onehot, tfeat)

    return cost[:, :nq, :]        # drop padded prediction rows before D2H copy


# --------------------------------------------------------------------------
# Host-side Hungarian solver (shortest augmenting path, O(n^2 m), n <= m)
# TODO(synk): linear_sum_assignment is a sequential combinatorial solver with
# no clean Pallas equivalent; it runs on the host in NumPy (the original
# module also solves it on CPU via scipy).
# --------------------------------------------------------------------------
def _hungarian_col4row(cost):
    n, m = cost.shape
    INF = float("inf")
    u = np.zeros(n + 1)
    v = np.zeros(m + 1)
    p = np.zeros(m + 1, dtype=np.int64)
    way = np.zeros(m + 1, dtype=np.int64)
    for i in range(1, n + 1):
        p[0] = i
        j0 = 0
        minv = np.full(m + 1, INF)
        used = np.zeros(m + 1, dtype=bool)
        while True:
            used[j0] = True
            i0 = p[j0]
            delta = INF
            j1 = 0
            for j in range(1, m + 1):
                if not used[j]:
                    cur = cost[i0 - 1, j - 1] - u[i0] - v[j]
                    if cur < minv[j]:
                        minv[j] = cur
                        way[j] = j0
                    if minv[j] < delta:
                        delta = minv[j]
                        j1 = j
            for j in range(m + 1):
                if used[j]:
                    u[p[j]] += delta
                    v[j] -= delta
                else:
                    minv[j] -= delta
            j0 = j1
            if p[j0] == 0:
                break
        while True:
            j1 = way[j0]
            p[j0] = p[j1]
            j0 = j1
            if j0 == 0:
                break
    col4row = np.full(n, -1, dtype=np.int64)
    for j in range(1, m + 1):
        if p[j] != 0:
            col4row[p[j] - 1] = j - 1
    return col4row


def linear_sum_assignment_np(cost):
    cost = np.asarray(cost, dtype=np.float64)
    if cost.shape[0] > cost.shape[1]:
        col4row = _hungarian_col4row(cost.T)          # rows of transposed = targets
        row_ind = col4row                              # prediction indices
        col_ind = np.arange(cost.shape[1], dtype=np.int64)
        order = np.argsort(row_ind)
        return row_ind[order], col_ind[order]
    col4row = _hungarian_col4row(cost)
    return np.arange(cost.shape[0], dtype=np.int64), col4row


# --------------------------------------------------------------------------
# Full matcher forward (glue)
# --------------------------------------------------------------------------
def hungarian_matcher_forward(outputs, targets,
                              cost_class=1.0, cost_bbox=1.0, cost_giou=1.0):
    bs, nq, _ = outputs["pred_logits"].shape
    sizes = [int(t["labels"].shape[0]) for t in targets]
    if all(s == 0 for s in sizes):
        return [(np.array([], dtype=np.int64), np.array([], dtype=np.int64))
                for _ in range(bs)], None

    # Re-pack ragged per-batch targets into a dense (bs, t_max) layout so the
    # kernel only computes each batch's own (block-diagonal) target columns.
    t_max = max(sizes)
    unit = jnp.asarray(_UNIT_BOX, jnp.float32)
    ids_b, boxes_b = [], []
    for t in targets:
        s = int(t["labels"].shape[0])
        lab = t["labels"].astype(jnp.int32)
        box = t["boxes"].astype(jnp.float32)
        if s < t_max:
            lab = jnp.pad(lab, (0, t_max - s))
            box = jnp.concatenate([box, jnp.broadcast_to(unit, (t_max - s, 4))], 0)
        ids_b.append(lab)
        boxes_b.append(box)
    tgt_ids_b = jnp.stack(ids_b)          # (bs, t_max)
    tgt_boxes_b = jnp.stack(boxes_b)      # (bs, t_max, 4)

    C = compute_cost_blocks(outputs["pred_logits"], outputs["pred_boxes"],
                            tgt_ids_b, tgt_boxes_b,
                            cost_class, cost_bbox, cost_giou)
    C_np = np.asarray(jax.block_until_ready(C))   # (bs, nq, t_pad) block-diag only

    indices = []
    for b in range(bs):
        s = sizes[b]
        if s == 0:
            indices.append((np.array([], dtype=np.int64),
                            np.array([], dtype=np.int64)))
            continue
        r, c = linear_sum_assignment_np(C_np[b, :, :s])
        indices.append((r.astype(np.int64), c.astype(np.int64)))
    return indices, C


# --------------------------------------------------------------------------
# NumPy reference for the cost matrix (to sanity-check the kernel)
# --------------------------------------------------------------------------
def _ref_cost_np(pred_logits, pred_boxes, tgt_ids, tgt_boxes, wc, wb, wg):
    nc = pred_logits.shape[-1]
    logits = np.asarray(pred_logits, np.float64).reshape(-1, nc)
    ob = np.asarray(pred_boxes, np.float64).reshape(-1, 4)
    ids = np.clip(np.asarray(tgt_ids), 0, nc - 1)
    tb = np.asarray(tgt_boxes, np.float64)
    p = 1.0 / (1.0 + np.exp(-logits))
    alpha, gamma, eps = 0.25, 2.0, 1e-8
    neg = (1 - alpha) * p ** gamma * -np.log(1 - p + eps)
    pos = alpha * (1 - p) ** gamma * -np.log(p + eps)
    cost_class = pos[:, ids] - neg[:, ids]
    cost_bbox = np.abs(ob[:, None, :] - tb[None, :, :]).sum(-1)

    def xyxy(b):
        return np.stack([b[:, 0] - 0.5 * b[:, 2], b[:, 1] - 0.5 * b[:, 3],
                         b[:, 0] + 0.5 * b[:, 2], b[:, 1] + 0.5 * b[:, 3]], -1)
    a, b2 = xyxy(ob), xyxy(tb)
    area_a = (a[:, 2] - a[:, 0]) * (a[:, 3] - a[:, 1])
    area_b = (b2[:, 2] - b2[:, 0]) * (b2[:, 3] - b2[:, 1])
    lt = np.maximum(a[:, None, :2], b2[None, :, :2])
    rb = np.minimum(a[:, None, 2:], b2[None, :, 2:])
    wh = np.clip(rb - lt, 0, None)
    inter = wh[..., 0] * wh[..., 1]
    union = area_a[:, None] + area_b[None, :] - inter
    iou = inter / union
    lt2 = np.minimum(a[:, None, :2], b2[None, :, :2])
    rb2 = np.maximum(a[:, None, 2:], b2[None, :, 2:])
    wh2 = np.clip(rb2 - lt2, 0, None)
    area_c = wh2[..., 0] * wh2[..., 1]
    giou = iou - (area_c - union) / area_c
    C = wb * cost_bbox + wc * cost_class + wg * (-giou)
    return C.reshape(pred_logits.shape[0], pred_logits.shape[1], -1)


# --------------------------------------------------------------------------
if __name__ == "__main__":
    key = jax.random.PRNGKey(0)
    bs, num_queries, num_classes = 2, 8, 32
    sizes = [3, 4]   # targets per batch element

    k1, k2, k3, k4, _ = jax.random.split(key, 5)
    pred_logits = jax.random.normal(k1, (bs, num_queries, num_classes), jnp.float32)
    pred_cxcy = jax.random.uniform(k2, (bs, num_queries, 2), minval=0.2, maxval=0.8)
    pred_wh = jax.random.uniform(k3, (bs, num_queries, 2), minval=0.05, maxval=0.3)
    pred_boxes = jnp.concatenate([pred_cxcy, pred_wh], axis=-1).astype(jnp.float32)

    targets = []
    tk = k4
    for s in sizes:
        tk, ka, kb, kc = jax.random.split(tk, 4)
        labels = jax.random.randint(ka, (s,), 0, num_classes, dtype=jnp.int32)
        cxcy = jax.random.uniform(kb, (s, 2), minval=0.2, maxval=0.8)
        wh = jax.random.uniform(kc, (s, 2), minval=0.05, maxval=0.3)
        targets.append({"labels": labels,
                        "boxes": jnp.concatenate([cxcy, wh], -1).astype(jnp.float32)})

    outputs = {"pred_logits": pred_logits, "pred_boxes": pred_boxes}
    indices, C = hungarian_matcher_forward(outputs, targets,
                                           cost_class=1.0, cost_bbox=1.0, cost_giou=1.0)
    C = jax.block_until_ready(C)

    # Sanity-check the block-diagonal kernel cost against the NumPy reference.
    # Tolerance 1e-2: the class-cost matmul lhs is bf16 and iou/giou use the
    # EUP approx reciprocal.
    tgt_ids = jnp.concatenate([t["labels"] for t in targets])
    tgt_boxes = jnp.concatenate([t["boxes"] for t in targets])
    C_ref = _ref_cost_np(pred_logits, pred_boxes, tgt_ids, tgt_boxes, 1.0, 1.0, 1.0)
    C_np = np.asarray(C)
    offs = np.concatenate([[0], np.cumsum(sizes)])
    for b in range(bs):
        blk = C_np[b, :num_queries, :sizes[b]]
        ref = C_ref[b, :, offs[b]:offs[b + 1]]
        assert np.allclose(blk, ref, rtol=1e-2, atol=1e-2), "cost block mismatch"

    for (r, c), s in zip(indices, sizes):
        assert len(r) == s and len(c) == s
        assert len(set(map(int, r))) == s
        assert sorted(map(int, c)) == list(range(s))

    print("KERNEL_OK")
</pallas_src>

<mosaic_0001>
module attributes {stable_mosaic.version = 11 : i64} {
  func.func @_cost_kernel(%arg0: i32, %arg1: i32, %arg2: i32, %arg3: memref<1x8x128xbf16, #tpu.memory_space<vmem>>, %arg4: memref<1x8x16xf32, #tpu.memory_space<vmem>>, %arg5: memref<1x128x128xbf16, #tpu.memory_space<vmem>>, %arg6: memref<1x16x128xf32, #tpu.memory_space<vmem>>, %arg7: memref<1x8x128xf32, #tpu.memory_space<vmem>>) attributes {dimension_semantics = [#tpu.dimension_semantics<parallel>, #tpu.dimension_semantics<parallel>, #tpu.dimension_semantics<parallel>], iteration_bounds = array<i64: 2, 1, 1>, scalar_prefetch = 0 : i64, scratch_operands = 0 : i64, tpu.core_type = #tpu.core_type<tc>, window_params = [{transform_indices = @transform_0, window_bounds = array<i64: 1, 8, 128>}, {transform_indices = @transform_1, window_bounds = array<i64: 1, 8, 16>}, {transform_indices = @transform_2, window_bounds = array<i64: 1, 128, 128>}, {transform_indices = @transform_3, window_bounds = array<i64: 1, 16, 128>}, {transform_indices = @transform_4, window_bounds = array<i64: 1, 8, 128>}]} {
    %c0 = arith.constant 0 : index
    %c0_0 = arith.constant 0 : index
    %c0_1 = arith.constant 0 : index
    %0 = vector.load %arg3[%c0, %c0_0, %c0_1] : memref<1x8x128xbf16, #tpu.memory_space<vmem>>, vector<1x8x128xbf16>
    %1 = vector.shape_cast %0 : vector<1x8x128xbf16> to vector<8x128xbf16>
    %c0_2 = arith.constant 0 : index
    %c0_3 = arith.constant 0 : index
    %c0_4 = arith.constant 0 : index
    %2 = vector.load %arg5[%c0_2, %c0_3, %c0_4] : memref<1x128x128xbf16, #tpu.memory_space<vmem>>, vector<1x128x128xbf16>
    %3 = vector.shape_cast %2 : vector<1x128x128xbf16> to vector<128x128xbf16>
    %cst = arith.constant dense<0.000000e+00> : vector<8x128xf32>
    %4 = tpu.matmul %1, %3, %cst {dimension_numbers = #tpu.dot_dimension_numbers<[1], [0], [0], [1], [0, 0, 1, 1], [], []>} : vector<8x128xbf16>, vector<128x128xbf16>, vector<8x128xf32> -> vector<8x128xf32>
    %c0_5 = arith.constant 0 : index
    %c0_6 = arith.constant 0 : index
    %c0_7 = arith.constant 0 : index
    %5 = vector.load %arg4[%c0_5, %c0_6, %c0_7] : memref<1x8x16xf32, #tpu.memory_space<vmem>>, vector<1x8x16xf32>
    %6 = vector.shape_cast %5 : vector<1x8x16xf32> to vector<8x16xf32>
    %c0_8 = arith.constant 0 : index
    %c0_9 = arith.constant 0 : index
    %c0_10 = arith.constant 0 : index
    %7 = vector.load %arg6[%c0_8, %c0_9, %c0_10] : memref<1x16x128xf32, #tpu.memory_space<vmem>>, vector<1x16x128xf32>
    %8 = vector.shape_cast %7 : vector<1x16x128xf32> to vector<16x128xf32>
    %9 = vector.extract_strided_slice %6 {offsets = [0, 0], sizes = [8, 1], strides = [1, 1]} : vector<8x16xf32> to vector<8x1xf32>
    %10 = vector.extract_strided_slice %8 {offsets = [0, 0], sizes = [1, 128], strides = [1, 1]} : vector<16x128xf32> to vector<1x128xf32>
    %11 = vector.broadcast %9 : vector<8x1xf32> to vector<8x128xf32>
    %12 = vector.broadcast %10 : vector<1x128xf32> to vector<8x128xf32>
    %13 = arith.subf %11, %12 : vector<8x128xf32>
    %14 = math.absf %13 : vector<8x128xf32>
    %15 = arith.addf %4, %14 : vector<8x128xf32>
    %16 = vector.extract_strided_slice %6 {offsets = [0, 1], sizes = [8, 1], strides = [1, 1]} : vector<8x16xf32> to vector<8x1xf32>
    %17 = vector.extract_strided_slice %8 {offsets = [1, 0], sizes = [1, 128], strides = [1, 1]} : vector<16x128xf32> to vector<1x128xf32>
    %18 = vector.broadcast %16 : vector<8x1xf32> to vector<8x128xf32>
    %19 = vector.broadcast %17 : vector<1x128xf32> to vector<8x128xf32>
    %20 = arith.subf %18, %19 : vector<8x128xf32>
    %21 = math.absf %20 : vector<8x128xf32>
    %22 = arith.addf %15, %21 : vector<8x128xf32>
    %23 = vector.extract_strided_slice %6 {offsets = [0, 2], sizes = [8, 1], strides = [1, 1]} : vector<8x16xf32> to vector<8x1xf32>
    %24 = vector.extract_strided_slice %8 {offsets = [2, 0], sizes = [1, 128], strides = [1, 1]} : vector<16x128xf32> to vector<1x128xf32>
    %25 = vector.broadcast %23 : vector<8x1xf32> to vector<8x128xf32>
    %26 = vector.broadcast %24 : vector<1x128xf32> to vector<8x128xf32>
    %27 = arith.subf %25, %26 : vector<8x128xf32>
    %28 = math.absf %27 : vector<8x128xf32>
    %29 = arith.addf %22, %28 : vector<8x128xf32>
    %30 = vector.extract_strided_slice %6 {offsets = [0, 3], sizes = [8, 1], strides = [1, 1]} : vector<8x16xf32> to vector<8x1xf32>
    %31 = vector.extract_strided_slice %8 {offsets = [3, 0], sizes = [1, 128], strides = [1, 1]} : vector<16x128xf32> to vector<1x128xf32>
    %32 = vector.broadcast %30 : vector<8x1xf32> to vector<8x128xf32>
    %33 = vector.broadcast %31 : vector<1x128xf32> to vector<8x128xf32>
    %34 = arith.subf %32, %33 : vector<8x128xf32>
    %35 = math.absf %34 : vector<8x128xf32>
    %36 = arith.addf %29, %35 : vector<8x128xf32>
    %37 = vector.extract_strided_slice %6 {offsets = [0, 4], sizes = [8, 1], strides = [1, 1]} : vector<8x16xf32> to vector<8x1xf32>
    %38 = vector.extract_strided_slice %6 {offsets = [0, 5], sizes = [8, 1], strides = [1, 1]} : vector<8x16xf32> to vector<8x1xf32>
    %39 = vector.extract_strided_slice %6 {offsets = [0, 6], sizes = [8, 1], strides = [1, 1]} : vector<8x16xf32> to vector<8x1xf32>
    %40 = vector.extract_strided_slice %6 {offsets = [0, 7], sizes = [8, 1], strides = [1, 1]} : vector<8x16xf32> to vector<8x1xf32>
    %41 = vector.extract_strided_slice %6 {offsets = [0, 8], sizes = [8, 1], strides = [1, 1]} : vector<8x16xf32> to vector<8x1xf32>
    %42 = vector.extract_strided_slice %6 {offsets = [0, 9], sizes = [8, 1], strides = [1, 1]} : vector<8x16xf32> to vector<8x1xf32>
    %43 = vector.extract_strided_slice %6 {offsets = [0, 10], sizes = [8, 1], strides = [1, 1]} : vector<8x16xf32> to vector<8x1xf32>
    %44 = vector.extract_strided_slice %8 {offsets = [4, 0], sizes = [1, 128], strides = [1, 1]} : vector<16x128xf32> to vector<1x128xf32>
    %45 = vector.extract_strided_slice %8 {offsets = [5, 0], sizes = [1, 128], strides = [1, 1]} : vector<16x128xf32> to vector<1x128xf32>
    %46 = vector.extract_strided_slice %8 {offsets = [6, 0], sizes = [1, 128], strides = [1, 1]} : vector<16x128xf32> to vector<1x128xf32>
    %47 = vector.extract_strided_slice %8 {offsets = [7, 0], sizes = [1, 128], strides = [1, 1]} : vector<16x128xf32> to vector<1x128xf32>
    %48 = vector.extract_strided_slice %8 {offsets = [8, 0], sizes = [1, 128], strides = [1, 1]} : vector<16x128xf32> to vector<1x128xf32>
    %49 = vector.extract_strided_slice %8 {offsets = [9, 0], sizes = [1, 128], strides = [1, 1]} : vector<16x128xf32> to vector<1x128xf32>
    %50 = vector.extract_strided_slice %8 {offsets = [10, 0], sizes = [1, 128], strides = [1, 1]} : vector<16x128xf32> to vector<1x128xf32>
    %51 = vector.broadcast %39 : vector<8x1xf32> to vector<8x128xf32>
    %52 = vector.broadcast %46 : vector<1x128xf32> to vector<8x128xf32>
    %53 = arith.minimumf %51, %52 : vector<8x128xf32>
    %54 = vector.broadcast %37 : vector<8x1xf32> to vector<8x128xf32>
    %55 = vector.broadcast %44 : vector<1x128xf32> to vector<8x128xf32>
    %56 = arith.maximumf %54, %55 : vector<8x128xf32>
    %57 = arith.subf %53, %56 : vector<8x128xf32>
    %58 = vector.broadcast %40 : vector<8x1xf32> to vector<8x128xf32>
    %59 = vector.broadcast %47 : vector<1x128xf32> to vector<8x128xf32>
    %60 = arith.minimumf %58, %59 : vector<8x128xf32>
    %61 = vector.broadcast %38 : vector<8x1xf32> to vector<8x128xf32>
    %62 = vector.broadcast %45 : vector<1x128xf32> to vector<8x128xf32>
    %63 = arith.maximumf %61, %62 : vector<8x128xf32>
    %64 = arith.subf %60, %63 : vector<8x128xf32>
    %cst_11 = arith.constant 0.000000e+00 : f32
    %65 = vector.broadcast %cst_11 : f32 to vector<8x128xf32>
    %66 = arith.maximumf %57, %65 : vector<8x128xf32>
    %cst_12 = arith.constant 0.000000e+00 : f32
    %67 = vector.broadcast %cst_12 : f32 to vector<8x128xf32>
    %68 = arith.maximumf %64, %67 : vector<8x128xf32>
    %69 = arith.mulf %66, %68 : vector<8x128xf32>
    %70 = vector.broadcast %41 : vector<8x1xf32> to vector<8x128xf32>
    %71 = vector.broadcast %48 : vector<1x128xf32> to vector<8x128xf32>
    %72 = arith.addf %70, %71 : vector<8x128xf32>
    %73 = arith.subf %72, %69 : vector<8x128xf32>
    %74 = tpu.reciprocal %73 {approx = true} : vector<8x128xf32> -> vector<8x128xf32>
    %75 = arith.mulf %69, %74 : vector<8x128xf32>
    %76 = vector.broadcast %42 : vector<8x1xf32> to vector<8x128xf32>
    %77 = vector.broadcast %49 : vector<1x128xf32> to vector<8x128xf32>
    %78 = arith.addf %76, %77 : vector<8x128xf32>
    %79 = arith.subf %78, %57 : vector<8x128xf32>
    %80 = vector.broadcast %43 : vector<8x1xf32> to vector<8x128xf32>
    %81 = vector.broadcast %50 : vector<1x128xf32> to vector<8x128xf32>
    %82 = arith.addf %80, %81 : vector<8x128xf32>
    %83 = arith.subf %82, %64 : vector<8x128xf32>
    %84 = arith.mulf %79, %83 : vector<8x128xf32>
    %85 = arith.subf %84, %73 : vector<8x128xf32>
    %86 = tpu.reciprocal %84 {approx = true} : vector<8x128xf32> -> vector<8x128xf32>
    %87 = arith.mulf %85, %86 : vector<8x128xf32>
    %88 = arith.subf %75, %87 : vector<8x128xf32>
    %89 = arith.subf %36, %88 : vector<8x128xf32>
    %c0_13 = arith.constant 0 : index
    %c0_14 = arith.constant 0 : index
    %c0_15 = arith.constant 0 : index
    %90 = vector.load %arg7[%c0_13, %c0_14, %c0_15] : memref<1x8x128xf32, #tpu.memory_space<vmem>>, vector<1x8x128xf32>
    %91 = vector.shape_cast %90 : vector<1x8x128xf32> to vector<8x128xf32>
    %92 = vector.shape_cast %89 : vector<8x128xf32> to vector<1x8x128xf32>
    tpu.vector_store %arg7[%c0_13, %c0_14, %c0_15], %92 {strides = array<i32>} : memref<1x8x128xf32, #tpu.memory_space<vmem>>, vector<1x8x128xf32>,
    return
  }
  func.func @transform_0(%arg0: i32, %arg1: i32, %arg2: i32) -> (i32, i32, i32) {
    %c0_i32 = arith.constant 0 : i32
    %c0_i32_0 = arith.constant 0 : i32
    return %arg0, %arg1, %c0_i32 : i32, i32, i32
  }
  func.func @transform_1(%arg0: i32, %arg1: i32, %arg2: i32) -> (i32, i32, i32) {
    %c0_i32 = arith.constant 0 : i32
    %c0_i32_0 = arith.constant 0 : i32
    return %arg0, %arg1, %c0_i32 : i32, i32, i32
  }
  func.func @transform_2(%arg0: i32, %arg1: i32, %arg2: i32) -> (i32, i32, i32) {
    %c0_i32 = arith.constant 0 : i32
    %c0_i32_0 = arith.constant 0 : i32
    return %arg0, %c0_i32, %arg2 : i32, i32, i32
  }
  func.func @transform_3(%arg0: i32, %arg1: i32, %arg2: i32) -> (i32, i32, i32) {
    %c0_i32 = arith.constant 0 : i32
    %c0_i32_0 = arith.constant 0 : i32
    return %arg0, %c0_i32, %arg2 : i32, i32, i32
  }
  func.func @transform_4(%arg0: i32, %arg1: i32, %arg2: i32) -> (i32, i32, i32) {
    %c0_i32 = arith.constant 0 : i32
    return %arg0, %arg1, %arg2 : i32, i32, i32
  }
}

</mosaic_0001>

<llo_original>
// kernel: tpu_custom_call.1
$region0: #{tpu_custom_call.1}
  #allocation0 [shape = 'u32[]', space=smem, size = 0x4, offset = 0x4, fixed_abs, tag = 'smem constant byte address 0x4 - core index']
  #allocation1 [shape = 'u32[144,128]{1,0:T(1,128)}', space=vmem, size = 0x12000, scoped, tag = 'internal scratch']
  %s0 = inlined_call_operand.hbm [shape: bf16[2,8,128], index: 0, kind: input, shape index: {}]
  %s1 = inlined_call_operand.hbm [shape: f32[2,8,16], index: 1, kind: input, shape index: {}]
  %s2 = inlined_call_operand.hbm [shape: bf16[2,128,128], index: 2, kind: input, shape index: {}]
  %s3 = inlined_call_operand.hbm [shape: f32[2,16,128], index: 3, kind: input, shape index: {}]
  %s4 = inlined_call_operand.hbm [shape: f32[2,8,128], index: 4, kind: output, shape index: {}]
  %s5 = sld [smem:[#allocation0]]
  $region65: #{tpu_custom_call.1} parent=0
    _
  %s7 = ssub.s32 1, %s5
  %s8 = scalar_select 0, %s7, %s5
  $region1: #{tpu_custom_call.1} parent=0
    #allocation2 [shape = 'u8[4096]{0}', space=vmem, size = 0x1000, scoped, tag = 'input window, operand 0']
    #allocation3 [shape = 's32[2]{0}', space=sflag, size = 0x8, scoped, tag = 'scoped memory for tpu_custom_call.1']
    #allocation4 [shape = 's32[2]{0}', space=sflag, size = 0x8, scoped, tag = 'scoped memory for tpu_custom_call.1']
    #allocation5 [shape = 'u8[8192]{0}', space=vmem, size = 0x2000, scoped, tag = 'input window, operand 1']
    #allocation6 [shape = 's32[2]{0}', space=sflag, size = 0x8, scoped, tag = 'scoped memory for tpu_custom_call.1']
    #allocation7 [shape = 'u8[65536]{0}', space=vmem, size = 0x10000, scoped, tag = 'input window, operand 2']
    #allocation8 [shape = 'u8[16384]{0}', space=vmem, size = 0x4000, scoped, tag = 'input window, operand 3']
    #allocation9 [shape = 's32[2]{0}', space=sflag, size = 0x8, scoped, tag = 'scoped memory for tpu_custom_call.1']
    #allocation10 [shape = 'u8[8192]{0}', space=vmem, size = 0x2000, scoped, tag = 'output window, operand 0']
    %9 = vsyncpa [#allocation3], 0
    %s10 = scalar_lea.sflag [#allocation3], 1
    %11 = vsyncpa %s10, 0
    %12 = vsyncpa [#allocation6], 0
    %s13 = scalar_lea.sflag [#allocation6], 1
    %14 = vsyncpa %s13, 0
    %15 = vsyncpa [#allocation9], 0
    %s16 = scalar_lea.sflag [#allocation9], 1
    %17 = vsyncpa %s16, 0
    %18 = vsyncpa [#allocation4], 0
    %s19 = scalar_lea.sflag [#allocation4], 1
    %20 = vsyncpa %s19, 0
    loop: start=0, step=1, limit=4
    $region2: #{tpu_custom_call.1} parent=1 // loop_pre_header
      _
    $region3: #{tpu_custom_call.1} parent=1 // loop_header
      %s22 = sphi 0, %s26
      %p23 = scmp.ge.s32.totalorder %s22, 4
      %s29 = sphi 0, %s48
      %s30 = sphi 0, %s44
      %s31 = sphi 0, %s40
      %s32 = sphi 0, %s29
      %s33 = sphi 0, %s30
      %s34 = sphi 0, %s31
      %s35 = sphi 0, %s32
      %s36 = sphi 0, %s33
      %s37 = sphi 0, %s34
      %s53 = sphi 0, %s55
      %s56 = sphi 0, %s53
      %s57 = sphi 0, %s56
      %s73 = sphi 0, %s57
      %s81 = sphi 0, %s83
      %s84 = sphi 0, %s81
      %s85 = sphi 0, %s84
      %s101 = sphi 0, %s85
      %s109 = sphi 0, %s111
      %s112 = sphi 0, %s109
      %s113 = sphi 0, %s112
      %s129 = sphi 0, %s113
      %s137 = sphi 0, %s139
      %s140 = sphi 0, %s137
      %s141 = sphi 0, %s140
      %s157 = sphi 0, %s141
      %s167 = sphi 0, %s169
      %s170 = sphi 0, %s167
      %s171 = sphi 0, %s170
      %s187 = sphi 0, %s171
    $region4: #{tpu_custom_call.1} parent=1 // loop_header_branch
      %25 = sbr.rel (%p23) target = $region8
    $region5: #{tpu_custom_call.1} parent=1 // loop_body
      %s27 = ssub.s32 %s22, 1
      %s28 = ssub.s32 %s22, 2
      %s38 = sadd.s32 1, %s31
      %p39 = scmp.ge.s32.totalorder %s38, 1
      %s40 = scalar_select %p39, 0, %s38
      %s41 = sadd.s32 1, %s30
      %s42 = scalar_select %p39, %s41, %s30
      %p43 = scmp.ge.s32.totalorder %s42, 1
      %s44 = scalar_select %p43, 0, %s42
      %s45 = sadd.s32 1, %s29
      %s46 = scalar_select %p43, %s45, %s29
      %p47 = scmp.ge.s32.totalorder %s46, 2
      %s48 = scalar_select %p47, 0, %s46
      %s49 = ssub.s32 %s29, %s48
      %s50 = ssub.s32 %s30, %s44
      %s51 = sor.u32 %s49, %s50
      %p52 = scmp.eq.s32.totalorder %s51, 0
      %s54 = sadd.s32 %s53, 1
      %s55 = scalar_select %p52, %s53, %s54
      %p58 = pneg %p52
      %p59 = scmp.eq.s32.totalorder %s22, 1
      %p60 = por %p58, %p59
      %p61 = scmp.ne.s32.totalorder %s53, %s56
      %p62 = scmp.eq.s32.totalorder %s22, 0
      %p63 = por %p61, %p62
      %p64 = scmp.ne.s32.totalorder %s53, %s56
      %p65 = scmp.eq.s32.totalorder %s27, 1
      %p66 = por %p64, %p65
      %p67 = scmp.ne.s32.totalorder %s56, %s57
      %p68 = scmp.eq.s32.totalorder %s27, 0
      %p69 = por %p67, %p68
      %p70 = scmp.ne.s32.totalorder %s56, %s57
      %p71 = scmp.eq.s32.totalorder %s28, 1
      %p72 = por %p70, %p71
      %p74 = scmp.ne.s32.totalorder %s57, %s73
      %p75 = scmp.eq.s32.totalorder %s28, 0
      %p76 = por %p74, %p75
      %s77 = ssub.s32 %s29, %s48
      %s78 = ssub.s32 %s30, %s44
      %s79 = sor.u32 %s77, %s78
      %p80 = scmp.eq.s32.totalorder %s79, 0
      %s82 = sadd.s32 %s81, 1
      %s83 = scalar_select %p80, %s81, %s82
      %p86 = pneg %p80
      %p87 = scmp.eq.s32.totalorder %s22, 1
      %p88 = por %p86, %p87
      %p89 = scmp.ne.s32.totalorder %s81, %s84
      %p90 = scmp.eq.s32.totalorder %s22, 0
      %p91 = por %p89, %p90
      %p92 = scmp.ne.s32.totalorder %s81, %s84
      %p93 = scmp.eq.s32.totalorder %s27, 1
      %p94 = por %p92, %p93
      %p95 = scmp.ne.s32.totalorder %s84, %s85
      %p96 = scmp.eq.s32.totalorder %s27, 0
      %p97 = por %p95, %p96
      %p98 = scmp.ne.s32.totalorder %s84, %s85
      %p99 = scmp.eq.s32.totalorder %s28, 1
      %p100 = por %p98, %p99
      %p102 = scmp.ne.s32.totalorder %s85, %s101
      %p103 = scmp.eq.s32.totalorder %s28, 0
      %p104 = por %p102, %p103
      %s105 = ssub.s32 %s29, %s48
      %s106 = ssub.s32 %s31, %s40
      %s107 = sor.u32 %s105, %s106
      %p108 = scmp.eq.s32.totalorder %s107, 0
      %s110 = sadd.s32 %s109, 1
      %s111 = scalar_select %p108, %s109, %s110
      %p114 = pneg %p108
      %p115 = scmp.eq.s32.totalorder %s22, 1
      %p116 = por %p114, %p115
      %p117 = scmp.ne.s32.totalorder %s109, %s112
      %p118 = scmp.eq.s32.totalorder %s22, 0
      %p119 = por %p117, %p118
      %p120 = scmp.ne.s32.totalorder %s109, %s112
      %p121 = scmp.eq.s32.totalorder %s27, 1
      %p122 = por %p120, %p121
      %p123 = scmp.ne.s32.totalorder %s112, %s113
      %p124 = scmp.eq.s32.totalorder %s27, 0
      %p125 = por %p123, %p124
      %p126 = scmp.ne.s32.totalorder %s112, %s113
      %p127 = scmp.eq.s32.totalorder %s28, 1
      %p128 = por %p126, %p127
      %p130 = scmp.ne.s32.totalorder %s113, %s129
      %p131 = scmp.eq.s32.totalorder %s28, 0
      %p132 = por %p130, %p131
      %s133 = ssub.s32 %s29, %s48
      %s134 = ssub.s32 %s31, %s40
      %s135 = sor.u32 %s133, %s134
      %p136 = scmp.eq.s32.totalorder %s135, 0
      %s138 = sadd.s32 %s137, 1
      %s139 = scalar_select %p136, %s137, %s138
      %p142 = pneg %p136
      %p143 = scmp.eq.s32.totalorder %s22, 1
      %p144 = por %p142, %p143
      %p145 = scmp.ne.s32.totalorder %s137, %s140
      %p146 = scmp.eq.s32.totalorder %s22, 0
      %p147 = por %p145, %p146
      %p148 = scmp.ne.s32.totalorder %s137, %s140
      %p149 = scmp.eq.s32.totalorder %s27, 1
      %p150 = por %p148, %p149
      %p151 = scmp.ne.s32.totalorder %s140, %s141
      %p152 = scmp.eq.s32.totalorder %s27, 0
      %p153 = por %p151, %p152
      %p154 = scmp.ne.s32.totalorder %s140, %s141
      %p155 = scmp.eq.s32.totalorder %s28, 1
      %p156 = por %p154, %p155
      %p158 = scmp.ne.s32.totalorder %s141, %s157
      %p159 = scmp.eq.s32.totalorder %s28, 0
      %p160 = por %p158, %p159
      %s161 = ssub.s32 %s29, %s48
      %s162 = ssub.s32 %s30, %s44
      %s163 = sor.u32 %s161, %s162
      %s164 = ssub.s32 %s31, %s40
      %s165 = sor.u32 %s163, %s164
      %p166 = scmp.eq.s32.totalorder %s165, 0
      %s168 = sadd.s32 %s167, 1
      %s169 = scalar_select %p166, %s167, %s168
      %p172 = pneg %p166
      %p173 = scmp.eq.s32.totalorder %s22, 1
      %p174 = por %p172, %p173
      %p175 = scmp.ne.s32.totalorder %s167, %s170
      %p176 = scmp.eq.s32.totalorder %s22, 0
      %p177 = por %p175, %p176
      %p178 = scmp.ne.s32.totalorder %s167, %s170
      %p179 = scmp.eq.s32.totalorder %s27, 1
      %p180 = por %p178, %p179
      %p181 = scmp.ne.s32.totalorder %s170, %s171
      %p182 = scmp.eq.s32.totalorder %s27, 0
      %p183 = por %p181, %p182
      %p184 = scmp.ne.s32.totalorder %s170, %s171
      %p185 = scmp.eq.s32.totalorder %s28, 1
      %p186 = por %p184, %p185
      %p188 = scmp.ne.s32.totalorder %s171, %s187
      %p189 = scmp.eq.s32.totalorder %s28, 0
      %p190 = por %p188, %p189
      %p191 = scmp.le.s32.totalorder 1, %s22
      %p192 = scmp.lt.s32.totalorder %s22, 3
      %p193 = pnand %p191, %p192
      %p194 = pneg %p193
      // Predicated region
      $region9: #{tpu_custom_call.1} parent=5 // pred_check
        _
      $region10: #{tpu_custom_call.1} parent=5 // pred_check_branch
        %196 = sbr.rel (%p193) target = $region12
      $region11: #{tpu_custom_call.1} parent=5 // pred_region
        %s197 = ssub.s32 %s22, 1
      $region12: #{tpu_custom_call.1} parent=5 // pred_fallthru
        _
      %p198 = scmp.lt.s32.totalorder %s22, 2
      // Predicated region
      $region13: #{tpu_custom_call.1} parent=5 // pred_check
        %p199 = pneg %p198
      $region14: #{tpu_custom_call.1} parent=5 // pred_check_branch
        %201 = sbr.rel (%p199) target = $region16
      $region15: #{tpu_custom_call.1} parent=5 // pred_region
        // Predicated region
        $region17: #{tpu_custom_call.1} parent=15 // pred_check
          %p202 = pneg %p63
        $region18: #{tpu_custom_call.1} parent=15 // pred_check_branch
          %204 = sbr.rel (%p202) target = $region20
        $region19: #{tpu_custom_call.1} parent=15 // pred_region
          %s205 = sand.u32 %s53, 1
          %s206 = scalar_lea.sflag [#allocation3], %s205
          %s207 = sand.u32 %s53, 1
          %s208 = smul.addr %s207, 4
          %s209 = scalar_lea.vmem [#allocation2], %s208
          %s211 = ssub.s32 64, 64
          %212 = vsyncadd %s206, %s211
          %s213 = sadd.s32 %s30, %s29
          %s214 = smul.addr %s213, 64
          %s215 = scalar_lea.hbm %s0, %s214
          %s217 = sshll.u32 %s209, 4
          %s218 = int_to_ptr.vmem [resolvable:$true] %s217
          %220 = dma.hbm_to_vmem [thread:$0]  %s215, 64, %s218, %s206
        $region20: #{tpu_custom_call.1} parent=15 // pred_fallthru
          _
        // Predicated region
        $region21: #{tpu_custom_call.1} parent=15 // pred_check
          %p221 = pneg %p91
        $region22: #{tpu_custom_call.1} parent=15 // pred_check_branch
          %223 = sbr.rel (%p221) target = $region24
        $region23: #{tpu_custom_call.1} parent=15 // pred_region
          %s224 = sand.u32 %s22, 1
          %s225 = scalar_lea.sflag [#allocation6], %s224
          %s226 = sand.u32 %s81, 1
          %s227 = smul.addr %s226, 8
          %s228 = scalar_lea.vmem [#allocation5], %s227
          %s230 = ssub.s32 128, 128
          %231 = vsyncadd %s225, %s230
          %s232 = sadd.s32 %s30, %s29
          %s233 = smul.addr %s232, 128
          %s234 = scalar_lea.hbm %s1, %s233
          %s236 = sshll.u32 %s228, 4
          %s237 = int_to_ptr.vmem [resolvable:$true] %s236
          %239 = dma.hbm_to_vmem [thread:$0]  %s234, 128, %s237, %s225
        $region24: #{tpu_custom_call.1} parent=15 // pred_fallthru
          _
        // Predicated region
        $region25: #{tpu_custom_call.1} parent=15 // pred_check
          %p240 = pneg %p119
        $region26: #{tpu_custom_call.1} parent=15 // pred_check_branch
          %242 = sbr.rel (%p240) target = $region28
        $region27: #{tpu_custom_call.1} parent=15 // pred_region
          %s243 = sand.u32 %s22, 1
          %s244 = scalar_lea.sflag [#allocation6], %s243
          %s245 = sand.u32 %s109, 1
          %s246 = smul.addr %s245, 64
          %s247 = scalar_lea.vmem [#allocation7], %s246
          %s249 = ssub.s32 1024, 1024
          %250 = vsyncadd %s244, %s249
          %s251 = smul.addr %s29, 16
          %s252 = sadd.s32 %s31, %s251
          %s253 = smul.addr %s252, 64
          %s254 = scalar_lea.hbm %s2, %s253
          %s255 = sshll.u32 %s247, 4
          %s256 = int_to_ptr.vmem [resolvable:$true] %s255
          %261 = dma.hbm_to_vmem [thread:$0]  %s254, 1024, %s256, %s244, 64, 64, 4
        $region28: #{tpu_custom_call.1} parent=15 // pred_fallthru
          _
        // Predicated region
        $region29: #{tpu_custom_call.1} parent=15 // pred_check
          %p262 = pneg %p147
        $region30: #{tpu_custom_call.1} parent=15 // pred_check_branch
          %264 = sbr.rel (%p262) target = $region32
        $region31: #{tpu_custom_call.1} parent=15 // pred_region
          %s265 = sand.u32 %s137, 1
          %s266 = scalar_lea.sflag [#allocation9], %s265
          %s267 = sand.u32 %s137, 1
          %s268 = smul.addr %s267, 16
          %s269 = scalar_lea.vmem [#allocation8], %s268
          %s271 = ssub.s32 256, 256
          %272 = vsyncadd %s266, %s271
          %s273 = smul.addr %s29, 2
          %s274 = sadd.s32 %s31, %s273
          %s275 = smul.addr %s274, 128
          %s276 = scalar_lea.hbm %s3, %s275
          %s277 = sshll.u32 %s269, 4
          %s278 = int_to_ptr.vmem [resolvable:$true] %s277
          %283 = dma.hbm_to_vmem [thread:$0]  %s276, 256, %s278, %s266, 128, 128, 8
        $region32: #{tpu_custom_call.1} parent=15 // pred_fallthru
          _
      $region16: #{tpu_custom_call.1} parent=5 // pred_fallthru
        _
      %p284 = scmp.le.s32.totalorder 1, %s22
      %p285 = scmp.lt.s32.totalorder %s22, 3
      %p286 = pnand %p284, %p285
      %p287 = pneg %p286
      // Predicated region
      $region33: #{tpu_custom_call.1} parent=5 // pred_check
        _
      $region34: #{tpu_custom_call.1} parent=5 // pred_check_branch
        %289 = sbr.rel (%p286) target = $region36
      $region35: #{tpu_custom_call.1} parent=5 // pred_region
        %s290 = ssub.s32 %s22, 1
        %s291 = sand.u32 %s56, 1
        %s292 = scalar_lea.sflag [#allocation3], %s291
        %s293 = sand.u32 %s56, 1
        %s294 = smul.addr %s293, 4
        %s295 = scalar_lea.vmem [#allocation2], %s294
        // Predicated region
        $region37: #{tpu_custom_call.1} parent=35 // pred_check
          %p296 = pneg %p69
        $region38: #{tpu_custom_call.1} parent=35 // pred_check_branch
          %298 = sbr.rel (%p296) target = $region40
        $region39: #{tpu_custom_call.1} parent=35 // pred_region
          %299 = dma.done %s292, 64
        $region40: #{tpu_custom_call.1} parent=35 // pred_fallthru
          _
        %s300 = sand.u32 %s27, 1
        %s301 = scalar_lea.sflag [#allocation6], %s300
        %s302 = sand.u32 %s84, 1
        %s303 = smul.addr %s302, 8
        %s304 = scalar_lea.vmem [#allocation5], %s303
        // Predicated region
        $region41: #{tpu_custom_call.1} parent=35 // pred_check
          %p305 = pneg %p97
        $region42: #{tpu_custom_call.1} parent=35 // pred_check_branch
          %307 = sbr.rel (%p305) target = $region44
        $region43: #{tpu_custom_call.1} parent=35 // pred_region
          %308 = dma.done %s301, 128
        $region44: #{tpu_custom_call.1} parent=35 // pred_fallthru
          _
        %s309 = sand.u32 %s27, 1
        %s310 = scalar_lea.sflag [#allocation6], %s309
        %s311 = sand.u32 %s112, 1
        %s312 = smul.addr %s311, 64
        %s313 = scalar_lea.vmem [#allocation7], %s312
        // Predicated region
        $region45: #{tpu_custom_call.1} parent=35 // pred_check
          %p314 = pneg %p125
        $region46: #{tpu_custom_call.1} parent=35 // pred_check_branch
          %316 = sbr.rel (%p314) target = $region48
        $region47: #{tpu_custom_call.1} parent=35 // pred_region
          %317 = dma.done %s310, 1024
        $region48: #{tpu_custom_call.1} parent=35 // pred_fallthru
          _
        %s318 = sand.u32 %s140, 1
        %s319 = scalar_lea.sflag [#allocation9], %s318
        %s320 = sand.u32 %s140, 1
        %s321 = smul.addr %s320, 16
        %s322 = scalar_lea.vmem [#allocation8], %s321
        // Predicated region
        $region49: #{tpu_custom_call.1} parent=35 // pred_check
          %p323 = pneg %p153
        $region50: #{tpu_custom_call.1} parent=35 // pred_check_branch
          %325 = sbr.rel (%p323) target = $region52
        $region51: #{tpu_custom_call.1} parent=35 // pred_region
          %326 = dma.done %s319, 256
        $region52: #{tpu_custom_call.1} parent=35 // pred_fallthru
          _
        %s327 = sand.u32 %s56, 1
        %s328 = scalar_lea.sflag [#allocation3], %s327
        %s329 = sand.u32 %s56, 1
        %s330 = smul.addr %s329, 4
        %s331 = scalar_lea.vmem [#allocation2], %s330
        %p332 = pneg %p69
        %p333 = pneg %p66
        %s334 = sand.u32 %s27, 1
        %s335 = scalar_lea.sflag [#allocation6], %s334
        %s336 = sand.u32 %s84, 1
        %s337 = smul.addr %s336, 8
        %s338 = scalar_lea.vmem [#allocation5], %s337
        %p339 = pneg %p97
        %p340 = pneg %p94
        %s341 = sand.u32 %s27, 1
        %s342 = scalar_lea.sflag [#allocation6], %s341
        %s343 = sand.u32 %s112, 1
        %s344 = smul.addr %s343, 64
        %s345 = scalar_lea.vmem [#allocation7], %s344
        %p346 = pneg %p125
        %p347 = pneg %p122
        %s348 = sand.u32 %s140, 1
        %s349 = scalar_lea.sflag [#allocation9], %s348
        %s350 = sand.u32 %s140, 1
        %s351 = smul.addr %s350, 16
        %s352 = scalar_lea.vmem [#allocation8], %s351
        %p353 = pneg %p153
        %p354 = pneg %p150
        %p355 = pneg %p183
        %p356 = pneg %p180
        %s357 = sand.u32 %s170, 1
        %s358 = scalar_lea.sflag [#allocation4], %s357
        %s359 = sand.u32 %s170, 1
        %s360 = smul.addr %s359, 8
        %s361 = scalar_lea.vmem [#allocation10], %s360
        %v363 = vld [vmem:[%s295] sm:$0xf]
        %v364 = vld [vmem:[%s313] sm:$0xf]
        %v365 = vld [vmem:[%s313 + $0x4] sm:$0xf]
        %v366 = vld [vmem:[%s313 + $0x8] sm:$0xf]
        %v367 = vld [vmem:[%s313 + $0xc] sm:$0xf]
        %v368 = vld [vmem:[%s313 + $0x10] sm:$0xf]
        %v369 = vld [vmem:[%s313 + $0x14] sm:$0xf]
        %v370 = vld [vmem:[%s313 + $0x18] sm:$0xf]
        %v371 = vld [vmem:[%s313 + $0x1c] sm:$0xf]
        %v372 = vld [vmem:[%s313 + $0x20] sm:$0xf]
        %v373 = vld [vmem:[%s313 + $0x24] sm:$0xf]
        %v374 = vld [vmem:[%s313 + $0x28] sm:$0xf]
        %v375 = vld [vmem:[%s313 + $0x2c] sm:$0xf]
        %v376 = vld [vmem:[%s313 + $0x30] sm:$0xf]
        %v377 = vld [vmem:[%s313 + $0x34] sm:$0xf]
        %v378 = vld [vmem:[%s313 + $0x38] sm:$0xf]
        %v379 = vld [vmem:[%s313 + $0x3c] sm:$0xf]
        %v380 = vld [vmem:[%s304] sm:$0xff]
        %v381 = vld [vmem:[%s322] sm:$0xff]
        %v382 = vld [vmem:[%s322 + $0x8] sm:$0xff]
        %384 = vset.pattern.permute.xlu0 0
        %385 = vperm.xlu0 %384, %v380
        %v386 = vpop.permute.xlu0 %385
        %v388 = vlaneseq
        %v389 = vshrl.u32 %v388, 7
        %v390 = vsub.s32 0, %v389
        %v391 = vrot.slane %v381, %v390
        %v392 = vsub.f32 %v386, %v391
        %v393 = vand.u32 2147483647, %v392
        %v410 = vunpack.c.l.b16 %v364
        %v411 = vunpack.c.l.b16 %v365
        %v412 = vunpack.c.l.b16 %v366
        %v413 = vunpack.c.l.b16 %v367
        %v414 = vunpack.c.l.b16 %v368
        %v415 = vunpack.c.l.b16 %v369
        %v416 = vunpack.c.l.b16 %v370
        %v417 = vunpack.c.l.b16 %v371
        %v418 = vunpack.c.l.b16 %v372
        %v419 = vunpack.c.l.b16 %v373
        %v420 = vunpack.c.l.b16 %v374
        %v421 = vunpack.c.l.b16 %v375
        %v422 = vunpack.c.l.b16 %v376
        %v423 = vunpack.c.l.b16 %v377
        %v424 = vunpack.c.l.b16 %v378
        %v425 = vunpack.c.l.b16 %v379
        %v426 = vpack.c.b16 %v411, %v410
        %v427 = vpack.c.b16 %v413, %v412
        %v428 = vpack.c.b16 %v415, %v414
        %v429 = vpack.c.b16 %v417, %v416
        %v430 = vpack.c.b16 %v419, %v418
        %v431 = vpack.c.b16 %v421, %v420
        %v432 = vpack.c.b16 %v423, %v422
        %v433 = vpack.c.b16 %v425, %v424
        %442 = vmatprep.subr.bf16.mxu0 0
        %443 = vmatpush1.bf16.msra.mxu0 %v426
        %444 = vmatprep.subr.bf16.mxu0 0
        %445 = vmatpush1.bf16.msra.mxu0 %v427
        %446 = vmatprep.subr.bf16.mxu0 0
        %447 = vmatpush1.bf16.msra.mxu0 %v428
        %448 = vmatprep.subr.bf16.mxu0 0
        %449 = vmatpush1.bf16.msra.mxu0 %v429
        %450 = vmatprep.subr.bf16.mxu0 0
        %451 = vmatpush1.bf16.msra.mxu0 %v430
        %452 = vmatprep.subr.bf16.mxu0 0
        %453 = vmatpush1.bf16.msra.mxu0 %v431
        %454 = vmatprep.subr.bf16.mxu0 0
        %455 = vmatpush1.bf16.msra.mxu0 %v432
        %456 = vmatprep.subr.bf16.mxu0 0
        %457 = vmatpush1.bf16.msra.mxu0 %v433
        %458 = vmatprep.subr.bf16.mxu0 0
        %459 = vmatpush1.bf16.msra.mxu0 0
        %460 = vmatprep.subr.bf16.mxu0 0
        %461 = vmatpush1.bf16.msra.mxu0 0
        %462 = vmatprep.subr.bf16.mxu0 0
        %463 = vmatpush1.bf16.msra.mxu0 0
        %464 = vmatprep.subr.bf16.mxu0 0
        %465 = vmatpush1.bf16.msra.mxu0 0
        %466 = vmatprep.subr.bf16.mxu0 0
        %467 = vmatpush1.bf16.msra.mxu0 0
        %468 = vmatprep.subr.bf16.mxu0 0
        %469 = vmatpush1.bf16.msra.mxu0 0
        %470 = vmatprep.subr.bf16.mxu0 0
        %471 = vmatpush1.bf16.msra.mxu0 0
        %472 = vmatprep.subr.bf16.mxu0 0
        %473 = vmatpush1.bf16.msra.mxu0 0
        %474 = vmatprep.mubr.bf16.mxu0 0
        %475 = vmatmul.mubr.bf16.gmra.mrb[0].mxu0 %v363
        %v476 = vpop.f32.mrb[0].mxu0
        %v477 = vadd.f32 %v393, %v476
        %v478 = vpop.f32.mrb[0].mxu0
        %v479 = vpop.f32.mrb[0].mxu0
        %v480 = vpop.f32.mrb[0].mxu0
        %481 = vdwg.mxu0
        %482 = vset.pattern.permute.xlu0 1
        %483 = vperm.xlu0 %482, %v380
        %v484 = vpop.permute.xlu0 %483
        %v486 = vlaneseq
        %v487 = vshrl.u32 %v486, 7
        %v488 = vsub.s32 1, %v487
        %v489 = vrot.slane %v381, %v488
        %v490 = vsub.f32 %v484, %v489
        %v491 = vand.u32 2147483647, %v490
        %v492 = vadd.f32 %v477, %v491
        %493 = vset.pattern.permute.xlu0 2
        %494 = vperm.xlu0 %493, %v380
        %v495 = vpop.permute.xlu0 %494
        %v497 = vlaneseq
        %v498 = vshrl.u32 %v497, 7
        %v499 = vsub.s32 2, %v498
        %v500 = vrot.slane %v381, %v499
        %v501 = vsub.f32 %v495, %v500
        %v502 = vand.u32 2147483647, %v501
        %v503 = vadd.f32 %v492, %v502
        %504 = vset.pattern.permute.xlu0 3
        %505 = vperm.xlu0 %504, %v380
        %v506 = vpop.permute.xlu0 %505
        %v508 = vlaneseq
        %v509 = vshrl.u32 %v508, 7
        %v510 = vsub.s32 3, %v509
        %v511 = vrot.slane %v381, %v510
        %v512 = vsub.f32 %v506, %v511
        %v513 = vand.u32 2147483647, %v512
        %v514 = vadd.f32 %v503, %v513
        %515 = vset.pattern.permute.xlu0 6
        %516 = vperm.xlu0 %515, %v380
        %v517 = vpop.permute.xlu0 %516
        %v519 = vlaneseq
        %v520 = vshrl.u32 %v519, 7
        %v521 = vsub.s32 6, %v520
        %v522 = vrot.slane %v381, %v521
        %v523 = vmin.f32 %v517, %v522
        %524 = vset.pattern.permute.xlu0 4
        %525 = vperm.xlu0 %524, %v380
        %v526 = vpop.permute.xlu0 %525
        %v528 = vlaneseq
        %v529 = vshrl.u32 %v528, 7
        %v530 = vsub.s32 4, %v529
        %v531 = vrot.slane %v381, %v530
        %v532 = vmax.f32 %v526, %v531
        %v533 = vsub.f32 %v523, %v532
        %534 = vset.pattern.permute.xlu0 7
        %535 = vperm.xlu0 %534, %v380
        %v536 = vpop.permute.xlu0 %535
        %v538 = vlaneseq
        %v539 = vshrl.u32 %v538, 7
        %v540 = vsub.s32 7, %v539
        %v541 = vrot.slane %v381, %v540
        %v542 = vmin.f32 %v536, %v541
        %543 = vset.pattern.permute.xlu0 5
        %544 = vperm.xlu0 %543, %v380
        %v545 = vpop.permute.xlu0 %544
        %v547 = vlaneseq
        %v548 = vshrl.u32 %v547, 7
        %v549 = vsub.s32 5, %v548
        %v550 = vrot.slane %v381, %v549
        %v551 = vmax.f32 %v545, %v550
        %v552 = vsub.f32 %v542, %v551
        %v553 = vmax.f32 %v533, 0.0
        %v554 = vmax.f32 %v552, 0.0
        %v555 = vmul.f32 %v553, %v554
        %556 = vset.pattern.permute.xlu0 8
        %557 = vperm.xlu0 %556, %v380
        %v558 = vpop.permute.xlu0 %557
        %v560 = vlaneseq
        %v561 = vshrl.u32 %v560, 7
        %v562 = vsub.s32 0, %v561
        %v563 = vrot.slane %v382, %v562
        %v564 = vadd.f32 %v558, %v563
        %v565 = vsub.f32 %v564, %v555
        %v566 = vrcp.pop %v565
        %v567 = vmul.f32 %v555, %v566
        %568 = vset.pattern.permute.xlu0 9
        %569 = vperm.xlu0 %568, %v380
        %v570 = vpop.permute.xlu0 %569
        %v572 = vlaneseq
        %v573 = vshrl.u32 %v572, 7
        %v574 = vsub.s32 1, %v573
        %v575 = vrot.slane %v382, %v574
        %v576 = vadd.f32 %v570, %v575
        %v577 = vsub.f32 %v576, %v533
        %578 = vset.pattern.permute.xlu0 10
        %579 = vperm.xlu0 %578, %v380
        %v580 = vpop.permute.xlu0 %579
        %v582 = vlaneseq
        %v583 = vshrl.u32 %v582, 7
        %v584 = vsub.s32 2, %v583
        %v585 = vrot.slane %v382, %v584
        %v586 = vadd.f32 %v580, %v585
        %v587 = vsub.f32 %v586, %v552
        %v588 = vmul.f32 %v577, %v587
        %v589 = vsub.f32 %v588, %v565
        %v590 = vrcp.pop %v588
        %v591 = vmul.f32 %v589, %v590
        %v592 = vsub.f32 %v567, %v591
        %v593 = vsub.f32 %v514, %v592
        %594 = vst [vmem:[%s361] sm:$0xff] %v593
        %s595 = sand.u32 %s170, 1
        %s596 = scalar_lea.sflag [#allocation4], %s595
        %s597 = sand.u32 %s170, 1
        %s598 = smul.addr %s597, 8
        %s599 = scalar_lea.vmem [#allocation10], %s598
        // Predicated region
        $region53: #{tpu_custom_call.1} parent=35 // pred_check
          %p600 = pneg %p180
        $region54: #{tpu_custom_call.1} parent=35 // pred_check_branch
          %602 = sbr.rel (%p600) target = $region56
        $region55: #{tpu_custom_call.1} parent=35 // pred_region
          %s604 = ssub.s32 128, 128
          %605 = vsyncadd %s596, %s604
          %s606 = sadd.s32 %s34, %s33
          %s607 = sadd.s32 %s606, %s32
          %s608 = smul.addr %s607, 128
          %s609 = scalar_lea.hbm %s4, %s608
          %s611 = sshll.u32 %s599, 4
          %s612 = int_to_ptr.vmem [resolvable:$true] %s611
          %614 = dma.vmem_to_hbm [thread:$0]  %s612, 128, %s609, %s596
        $region56: #{tpu_custom_call.1} parent=35 // pred_fallthru
          _
      $region36: #{tpu_custom_call.1} parent=5 // pred_fallthru
        _
      %p615 = scmp.le.s32.totalorder 2, %s22
      // Predicated region
      $region57: #{tpu_custom_call.1} parent=5 // pred_check
        %p616 = pneg %p615
      $region58: #{tpu_custom_call.1} parent=5 // pred_check_branch
        %618 = sbr.rel (%p616) target = $region60
      $region59: #{tpu_custom_call.1} parent=5 // pred_region
        %s619 = ssub.s32 %s22, 2
        // Predicated region
        $region61: #{tpu_custom_call.1} parent=59 // pred_check
          %p620 = pneg %p186
        $region62: #{tpu_custom_call.1} parent=59 // pred_check_branch
          %622 = sbr.rel (%p620) target = $region64
        $region63: #{tpu_custom_call.1} parent=59 // pred_region
          %s623 = sand.u32 %s171, 1
          %s624 = scalar_lea.sflag [#allocation4], %s623
          %s625 = sand.u32 %s171, 1
          %s626 = smul.addr %s625, 8
          %s627 = scalar_lea.vmem [#allocation10], %s626
          %628 = dma.done %s624, 128
        $region64: #{tpu_custom_call.1} parent=59 // pred_fallthru
          _
      $region60: #{tpu_custom_call.1} parent=5 // pred_fallthru
        _
    $region6: #{tpu_custom_call.1} parent=1 // loop_footer
      %s26 = sadd.s32 1, %s22
    $region7: #{tpu_custom_call.1} parent=1 // loop_footer_branch
      %21 = sbr.rel target = $region3
    $region8: #{tpu_custom_call.1} parent=1 // loop_exit
      _
    %629 = vsyncpa [#allocation3], 1
    %s630 = scalar_lea.sflag [#allocation3], 1
    %631 = vsyncpa %s630, 1
    %632 = vsyncpa [#allocation6], 1
    %s633 = scalar_lea.sflag [#allocation6], 1
    %634 = vsyncpa %s633, 1
    %635 = vsyncpa [#allocation9], 1
    %s636 = scalar_lea.sflag [#allocation9], 1
    %637 = vsyncpa %s636, 1
    %638 = vsyncpa [#allocation4], 1
    %s639 = scalar_lea.sflag [#allocation4], 1
    %640 = vsyncpa %s639, 1

</llo_original>
